<compile_context>
chip_gen: v7x
topology: tpu7x:2x2x1
jax: 0.10.0
libtpu: 0.0.40
codegen_flags: <defaults>
</compile_context>

<pallas_src>
import functools

import jax
import jax.numpy as jnp
from jax.experimental import pallas as pl
from jax.experimental.pallas import tpu as pltpu


def _round_up(x, m):
    return ((x + m - 1) // m) * m


# ----------------------------------------------------------------------------
# Kernel: fused MLP over one row-tile.  refs = [x, w0..w{L-1}, b0..b{L-1}, out]
# ----------------------------------------------------------------------------
def _mlp_head_kernel(*refs, num_layers):
    x_ref = refs[0]
    w_refs = refs[1:1 + num_layers]
    b_refs = refs[1 + num_layers:1 + 2 * num_layers]
    o_ref = refs[1 + 2 * num_layers]

    h = x_ref[...]                                   # (tm, in_dim), native dtype
    for i in range(num_layers):
        w = w_refs[i][...]
        acc = jnp.dot(h, w, preferred_element_type=jnp.float32)
        acc = acc + b_refs[i][...].astype(jnp.float32)
        if i < num_layers - 1:
            acc = jnp.maximum(acc, 0.0)              # ReLU on all but last layer
            # back to the weight dtype so the next matmul keeps the fast MXU path
            h = acc.astype(w_refs[i + 1].dtype)
        else:
            h = acc
    o_ref[...] = h.astype(o_ref.dtype)


# ----------------------------------------------------------------------------
# Wrapper: flatten leading dims, pad rows to the tile, pad last layer to a
# lane-dense (multiple-of-128) output width, run the fused kernel, slice back.
# ----------------------------------------------------------------------------
def mlp_prediction_head_forward(x, weights, biases, *, tm=256):
    num_layers = len(weights)
    in_dim = weights[0].shape[0]
    out_dim = weights[-1].shape[1]

    # lane-dense output: pad the final projection to a multiple of 128 columns
    out_pad = _round_up(out_dim, 128)
    if out_pad != out_dim:
        weights = list(weights[:-1]) + [
            jnp.pad(weights[-1], ((0, 0), (0, out_pad - out_dim)))]
        biases = list(biases[:-1]) + [
            jnp.pad(biases[-1], ((0, 0), (0, out_pad - out_dim)))]
    else:
        weights, biases = list(weights), list(biases)

    lead_shape = x.shape[:-1]
    x2 = x.reshape(-1, in_dim)
    m = x2.shape[0]
    tm_eff = min(tm, _round_up(m, 8))
    m_pad = _round_up(m, tm_eff)
    if m_pad != m:
        x2 = jnp.pad(x2, ((0, m_pad - m), (0, 0)))

    in_specs = [pl.BlockSpec((tm_eff, in_dim), lambda i: (i, 0))]
    # weights / biases: full blocks, constant index_map -> stay resident in VMEM
    for w in weights:
        in_specs.append(pl.BlockSpec(w.shape, lambda i: (0, 0)))
    for b in biases:
        in_specs.append(pl.BlockSpec(b.shape, lambda i: (0, 0)))

    out = pl.pallas_call(
        functools.partial(_mlp_head_kernel, num_layers=num_layers),
        out_shape=jax.ShapeDtypeStruct((m_pad, out_pad), x.dtype),
        grid=(m_pad // tm_eff,),
        in_specs=in_specs,
        out_specs=pl.BlockSpec((tm_eff, out_pad), lambda i: (i, 0)),
        compiler_params=pltpu.CompilerParams(
            dimension_semantics=("parallel",)),
    )(x2, *weights, *biases)

    out = out[:m, :out_dim]
    return out.reshape(*lead_shape, out_dim)


# ----------------------------------------------------------------------------
# Module
# ----------------------------------------------------------------------------
class GroundedAudioMLPPredictionHeadPallas:
    """MLP head: Linear->ReLU repeated, final Linear without ReLU."""

    def __init__(self, input_dim, hidden_dim, output_dim, num_layers, *,
                 key, dtype=jnp.float32):
        self.num_layers = num_layers
        dims = [input_dim] + [hidden_dim] * (num_layers - 1) + [output_dim]
        self.weights = []
        self.biases = []
        keys = jax.random.split(key, num_layers)
        for i, (n_in, n_out) in enumerate(zip(dims[:-1], dims[1:])):
            bound = 1.0 / (n_in ** 0.5)          # nn.Linear-style init range
            wk, bk = jax.random.split(keys[i])
            w = jax.random.uniform(wk, (n_in, n_out), dtype=jnp.float32,
                                   minval=-bound, maxval=bound).astype(dtype)
            b = jax.random.uniform(bk, (1, n_out), dtype=jnp.float32,
                                   minval=-bound, maxval=bound).astype(dtype)
            self.weights.append(w)
            self.biases.append(b)
        # TODO(synk): very large hidden_dim (>~1.5k) would need a K-tiled grid
        # axis instead of fully VMEM-resident weights.

    def __call__(self, x):
        return mlp_prediction_head_forward(x, self.weights, self.biases)


# Pure-JAX reference for correctness checking.
def _mlp_reference(x, weights, biases):
    h = x.astype(jnp.float32)
    n = len(weights)
    for i, (w, b) in enumerate(zip(weights, biases)):
        h = h @ w.astype(jnp.float32) + b.astype(jnp.float32)
        if i < n - 1:
            h = jnp.maximum(h, 0.0)
    return h


if __name__ == "__main__":
    key = jax.random.PRNGKey(0)
    k_param, k_x = jax.random.split(key)

    # batch=2, queries=8, input_dim=32, hidden_dim=32, output_dim=2, 3 layers
    B, Q, D, H, OUT, L = 2, 8, 32, 32, 2, 3

    head = GroundedAudioMLPPredictionHeadPallas(D, H, OUT, L, key=k_param)
    x = jax.random.normal(k_x, (B, Q, D), dtype=jnp.float32)

    y = head(x)
    jax.block_until_ready(y)

    y_ref = _mlp_reference(x.reshape(-1, D), head.weights, head.biases)
    y_ref = y_ref.reshape(B, Q, OUT)

    assert y.shape == (B, Q, OUT), y.shape
    max_err = float(jnp.max(jnp.abs(y.astype(jnp.float32) - y_ref)))
    assert max_err < 1e-3, f"max abs error {max_err}"

    print("KERNEL_OK")
</pallas_src>

<mosaic_0001>
module attributes {stable_mosaic.version = 11 : i64} {
  func.func @_mlp_head_kernel(%arg0: i32, %arg1: memref<16x32xf32, #tpu.memory_space<vmem>>, %arg2: memref<32x32xf32, #tpu.memory_space<vmem>>, %arg3: memref<32x32xf32, #tpu.memory_space<vmem>>, %arg4: memref<32x128xf32, #tpu.memory_space<vmem>>, %arg5: memref<1x32xf32, #tpu.memory_space<vmem>>, %arg6: memref<1x32xf32, #tpu.memory_space<vmem>>, %arg7: memref<1x128xf32, #tpu.memory_space<vmem>>, %arg8: memref<16x128xf32, #tpu.memory_space<vmem>>) attributes {dimension_semantics = [#tpu.dimension_semantics<parallel>], iteration_bounds = array<i64: 1>, scalar_prefetch = 0 : i64, scratch_operands = 0 : i64, tpu.core_type = #tpu.core_type<tc>, window_params = [{transform_indices = @transform_0, window_bounds = array<i64: 16, 32>}, {pipeline_mode = #tpu.pipeline_mode<synchronous>, transform_indices = @transform_1, window_bounds = array<i64: 32, 32>}, {pipeline_mode = #tpu.pipeline_mode<synchronous>, transform_indices = @transform_2, window_bounds = array<i64: 32, 32>}, {pipeline_mode = #tpu.pipeline_mode<synchronous>, transform_indices = @transform_3, window_bounds = array<i64: 32, 128>}, {pipeline_mode = #tpu.pipeline_mode<synchronous>, transform_indices = @transform_4, window_bounds = array<i64: 1, 32>}, {pipeline_mode = #tpu.pipeline_mode<synchronous>, transform_indices = @transform_5, window_bounds = array<i64: 1, 32>}, {pipeline_mode = #tpu.pipeline_mode<synchronous>, transform_indices = @transform_6, window_bounds = array<i64: 1, 128>}, {transform_indices = @transform_7, window_bounds = array<i64: 16, 128>}]} {
    %c0 = arith.constant 0 : index
    %c0_0 = arith.constant 0 : index
    %0 = vector.load %arg1[%c0, %c0_0] : memref<16x32xf32, #tpu.memory_space<vmem>>, vector<16x32xf32>
    %c0_1 = arith.constant 0 : index
    %c0_2 = arith.constant 0 : index
    %1 = vector.load %arg2[%c0_1, %c0_2] : memref<32x32xf32, #tpu.memory_space<vmem>>, vector<32x32xf32>
    %cst = arith.constant dense<0.000000e+00> : vector<16x32xf32>
    %2 = tpu.matmul %0, %1, %cst {dimension_numbers = #tpu.dot_dimension_numbers<[1], [0], [0], [1], [0, 0, 1, 1], [], []>} : vector<16x32xf32>, vector<32x32xf32>, vector<16x32xf32> -> vector<16x32xf32>
    %c0_3 = arith.constant 0 : index
    %c0_4 = arith.constant 0 : index
    %3 = vector.load %arg5[%c0_3, %c0_4] : memref<1x32xf32, #tpu.memory_space<vmem>>, vector<1x32xf32>
    %4 = vector.broadcast %3 : vector<1x32xf32> to vector<16x32xf32>
    %5 = arith.addf %2, %4 : vector<16x32xf32>
    %cst_5 = arith.constant 0.000000e+00 : f32
    %6 = vector.broadcast %cst_5 : f32 to vector<16x32xf32>
    %7 = arith.maximumf %5, %6 : vector<16x32xf32>
    %c0_6 = arith.constant 0 : index
    %c0_7 = arith.constant 0 : index
    %8 = vector.load %arg3[%c0_6, %c0_7] : memref<32x32xf32, #tpu.memory_space<vmem>>, vector<32x32xf32>
    %cst_8 = arith.constant dense<0.000000e+00> : vector<16x32xf32>
    %9 = tpu.matmul %7, %8, %cst_8 {dimension_numbers = #tpu.dot_dimension_numbers<[1], [0], [0], [1], [0, 0, 1, 1], [], []>} : vector<16x32xf32>, vector<32x32xf32>, vector<16x32xf32> -> vector<16x32xf32>
    %c0_9 = arith.constant 0 : index
    %c0_10 = arith.constant 0 : index
    %10 = vector.load %arg6[%c0_9, %c0_10] : memref<1x32xf32, #tpu.memory_space<vmem>>, vector<1x32xf32>
    %11 = vector.broadcast %10 : vector<1x32xf32> to vector<16x32xf32>
    %12 = arith.addf %9, %11 : vector<16x32xf32>
    %cst_11 = arith.constant 0.000000e+00 : f32
    %13 = vector.broadcast %cst_11 : f32 to vector<16x32xf32>
    %14 = arith.maximumf %12, %13 : vector<16x32xf32>
    %c0_12 = arith.constant 0 : index
    %c0_13 = arith.constant 0 : index
    %15 = vector.load %arg4[%c0_12, %c0_13] : memref<32x128xf32, #tpu.memory_space<vmem>>, vector<32x128xf32>
    %cst_14 = arith.constant dense<0.000000e+00> : vector<16x128xf32>
    %16 = tpu.matmul %14, %15, %cst_14 {dimension_numbers = #tpu.dot_dimension_numbers<[1], [0], [0], [1], [0, 0, 1, 1], [], []>} : vector<16x32xf32>, vector<32x128xf32>, vector<16x128xf32> -> vector<16x128xf32>
    %c0_15 = arith.constant 0 : index
    %c0_16 = arith.constant 0 : index
    %17 = vector.load %arg7[%c0_15, %c0_16] : memref<1x128xf32, #tpu.memory_space<vmem>>, vector<1x128xf32>
    %18 = vector.broadcast %17 : vector<1x128xf32> to vector<16x128xf32>
    %19 = arith.addf %16, %18 : vector<16x128xf32>
    %c0_17 = arith.constant 0 : index
    %c0_18 = arith.constant 0 : index
    %20 = vector.load %arg8[%c0_17, %c0_18] : memref<16x128xf32, #tpu.memory_space<vmem>>, vector<16x128xf32>
    tpu.vector_store %arg8[%c0_17, %c0_18], %19 {strides = array<i32>} : memref<16x128xf32, #tpu.memory_space<vmem>>, vector<16x128xf32>,
    return
  }
  func.func @transform_0(%arg0: i32) -> (i32, i32) {
    %c0_i32 = arith.constant 0 : i32
    %c0_i32_0 = arith.constant 0 : i32
    return %arg0, %c0_i32 : i32, i32
  }
  func.func @transform_1(%arg0: i32) -> (i32, i32) {
    %c0_i32 = arith.constant 0 : i32
    %c0_i32_0 = arith.constant 0 : i32
    %c0_i32_1 = arith.constant 0 : i32
    return %c0_i32, %c0_i32_0 : i32, i32
  }
  func.func @transform_2(%arg0: i32) -> (i32, i32) {
    %c0_i32 = arith.constant 0 : i32
    %c0_i32_0 = arith.constant 0 : i32
    %c0_i32_1 = arith.constant 0 : i32
    return %c0_i32, %c0_i32_0 : i32, i32
  }
  func.func @transform_3(%arg0: i32) -> (i32, i32) {
    %c0_i32 = arith.constant 0 : i32
    %c0_i32_0 = arith.constant 0 : i32
    %c0_i32_1 = arith.constant 0 : i32
    return %c0_i32, %c0_i32_0 : i32, i32
  }
  func.func @transform_4(%arg0: i32) -> (i32, i32) {
    %c0_i32 = arith.constant 0 : i32
    %c0_i32_0 = arith.constant 0 : i32
    %c0_i32_1 = arith.constant 0 : i32
    return %c0_i32, %c0_i32_0 : i32, i32
  }
  func.func @transform_5(%arg0: i32) -> (i32, i32) {
    %c0_i32 = arith.constant 0 : i32
    %c0_i32_0 = arith.constant 0 : i32
    %c0_i32_1 = arith.constant 0 : i32
    return %c0_i32, %c0_i32_0 : i32, i32
  }
  func.func @transform_6(%arg0: i32) -> (i32, i32) {
    %c0_i32 = arith.constant 0 : i32
    %c0_i32_0 = arith.constant 0 : i32
    %c0_i32_1 = arith.constant 0 : i32
    return %c0_i32, %c0_i32_0 : i32, i32
  }
  func.func @transform_7(%arg0: i32) -> (i32, i32) {
    %c0_i32 = arith.constant 0 : i32
    %c0_i32_0 = arith.constant 0 : i32
    return %arg0, %c0_i32 : i32, i32
  }
}

</mosaic_0001>

<llo_original>
// kernel: tpu_custom_call.1
$region0: #{tpu_custom_call.1}
  #allocation0 [shape = 'u32[]', space=smem, size = 0x4, offset = 0x4, fixed_abs, tag = 'smem constant byte address 0x4 - core index']
  #allocation1 [shape = 'u32[144,128]{1,0:T(1,128)}', space=vmem, size = 0x12000, scoped, tag = 'internal scratch']
  %s0 = inlined_call_operand.hbm [shape: f32[16,32], index: 0, kind: input, shape index: {}]
  %s1 = inlined_call_operand.hbm [shape: f32[32,32], index: 1, kind: input, shape index: {}]
  %s2 = inlined_call_operand.hbm [shape: f32[32,32], index: 2, kind: input, shape index: {}]
  %s3 = inlined_call_operand.hbm [shape: f32[32,128], index: 3, kind: input, shape index: {}]
  %s4 = inlined_call_operand.vmem [shape: f32[1,32], index: 4, kind: input, shape index: {}]
  %s5 = inlined_call_operand.vmem [shape: f32[1,32], index: 5, kind: input, shape index: {}]
  %s6 = inlined_call_operand.vmem [shape: f32[1,128], index: 6, kind: input, shape index: {}]
  %s7 = inlined_call_operand.hbm [shape: f32[16,128], index: 7, kind: output, shape index: {}]
  %s8 = sld [smem:[#allocation0]]
  $region54: #{tpu_custom_call.1} parent=0
    _
  %s10 = ssub.s32 1, %s8
  %s11 = scalar_select 0, %s10, %s8
  $region1: #{tpu_custom_call.1} parent=0
    #allocation2 [shape = 'u8[8192]{0}', space=vmem, size = 0x2000, scoped, tag = 'input window, operand 0, single buffered']
    #allocation3 [shape = 's32[1]{0}', space=sflag, size = 0x4, scoped, tag = 'scoped memory for tpu_custom_call.1']
    #allocation4 [shape = 's32[1]{0}', space=sflag, size = 0x4, scoped, tag = 'scoped memory for tpu_custom_call.1']
    #allocation5 [shape = 'u8[16384]{0}', space=vmem, size = 0x4000, scoped, tag = 'input window, operand 1, single buffered']
    #allocation6 [shape = 's32[1]{0}', space=sflag, size = 0x4, scoped, tag = 'scoped memory for tpu_custom_call.1']
    #allocation7 [shape = 'u8[16384]{0}', space=vmem, size = 0x4000, scoped, tag = 'input window, operand 2, single buffered']
    #allocation8 [shape = 'u8[16384]{0}', space=vmem, size = 0x4000, scoped, tag = 'input window, operand 3, single buffered']
    #allocation9 [shape = 's32[1]{0}', space=sflag, size = 0x4, scoped, tag = 'scoped memory for tpu_custom_call.1']
    #allocation10 [shape = 'u8[8192]{0}', space=vmem, size = 0x2000, scoped, tag = 'output window, operand 0, single buffered']
    %12 = vsyncpa [#allocation3], 0
    %13 = vsyncpa [#allocation6], 0
    %14 = vsyncpa [#allocation9], 0
    %15 = vsyncpa [#allocation4], 0
    // Predicated region
    $region2: #{tpu_custom_call.1} parent=1 // pred_check
      _
    $region3: #{tpu_custom_call.1} parent=1 // pred_check_branch
      %17 = sbr.rel (0) target = $region5
    $region4: #{tpu_custom_call.1} parent=1 // pred_region
      %s19 = ssub.s32 256, 256
      %20 = vsyncadd [#allocation3], %s19
      %s21 = sshll.u32 [#allocation2], 4
      %s22 = int_to_ptr.vmem [resolvable:$true] %s21
      %27 = dma.hbm_to_vmem [thread:$0]  %s0, 256, %s22, [#allocation3], 128, 128, 8
    $region5: #{tpu_custom_call.1} parent=1 // pred_fallthru
      _
    // Predicated region
    $region6: #{tpu_custom_call.1} parent=1 // pred_check
      _
    $region7: #{tpu_custom_call.1} parent=1 // pred_check_branch
      %29 = sbr.rel (0) target = $region9
    $region8: #{tpu_custom_call.1} parent=1 // pred_region
      %s31 = ssub.s32 512, 512
      %32 = vsyncadd [#allocation6], %s31
      %s33 = sshll.u32 [#allocation5], 4
      %s34 = int_to_ptr.vmem [resolvable:$true] %s33
      %39 = dma.hbm_to_vmem [thread:$0]  %s1, 512, %s34, [#allocation6], 128, 128, 8
    $region9: #{tpu_custom_call.1} parent=1 // pred_fallthru
      _
    // Predicated region
    $region10: #{tpu_custom_call.1} parent=1 // pred_check
      _
    $region11: #{tpu_custom_call.1} parent=1 // pred_check_branch
      %41 = sbr.rel (0) target = $region13
    $region12: #{tpu_custom_call.1} parent=1 // pred_region
      %s43 = ssub.s32 512, 512
      %44 = vsyncadd [#allocation6], %s43
      %s45 = sshll.u32 [#allocation7], 4
      %s46 = int_to_ptr.vmem [resolvable:$true] %s45
      %51 = dma.hbm_to_vmem [thread:$0]  %s2, 512, %s46, [#allocation6], 128, 128, 8
    $region13: #{tpu_custom_call.1} parent=1 // pred_fallthru
      _
    // Predicated region
    $region14: #{tpu_custom_call.1} parent=1 // pred_check
      _
    $region15: #{tpu_custom_call.1} parent=1 // pred_check_branch
      %53 = sbr.rel (0) target = $region17
    $region16: #{tpu_custom_call.1} parent=1 // pred_region
      %s55 = ssub.s32 512, 512
      %56 = vsyncadd [#allocation9], %s55
      %s57 = sshll.u32 [#allocation8], 4
      %s58 = int_to_ptr.vmem [resolvable:$true] %s57
      %63 = dma.hbm_to_vmem [thread:$0]  %s3, 512, %s58, [#allocation9], 128, 128, 8
    $region17: #{tpu_custom_call.1} parent=1 // pred_fallthru
      _
    // Predicated region
    $region18: #{tpu_custom_call.1} parent=1 // pred_check
      _
    $region19: #{tpu_custom_call.1} parent=1 // pred_check_branch
      %65 = sbr.rel (0) target = $region21
    $region20: #{tpu_custom_call.1} parent=1 // pred_region
      _
    $region21: #{tpu_custom_call.1} parent=1 // pred_fallthru
      _
    // Predicated region
    $region22: #{tpu_custom_call.1} parent=1 // pred_check
      _
    $region23: #{tpu_custom_call.1} parent=1 // pred_check_branch
      %67 = sbr.rel (0) target = $region25
    $region24: #{tpu_custom_call.1} parent=1 // pred_region
      _
    $region25: #{tpu_custom_call.1} parent=1 // pred_fallthru
      _
    // Predicated region
    $region26: #{tpu_custom_call.1} parent=1 // pred_check
      _
    $region27: #{tpu_custom_call.1} parent=1 // pred_check_branch
      %69 = sbr.rel (0) target = $region29
    $region28: #{tpu_custom_call.1} parent=1 // pred_region
      _
    $region29: #{tpu_custom_call.1} parent=1 // pred_fallthru
      _
    // Predicated region
    $region30: #{tpu_custom_call.1} parent=1 // pred_check
      _
    $region31: #{tpu_custom_call.1} parent=1 // pred_check_branch
      %71 = sbr.rel (0) target = $region33
    $region32: #{tpu_custom_call.1} parent=1 // pred_region
      %72 = dma.done [#allocation3], 256
    $region33: #{tpu_custom_call.1} parent=1 // pred_fallthru
      _
    // Predicated region
    $region34: #{tpu_custom_call.1} parent=1 // pred_check
      _
    $region35: #{tpu_custom_call.1} parent=1 // pred_check_branch
      %74 = sbr.rel (0) target = $region37
    $region36: #{tpu_custom_call.1} parent=1 // pred_region
      %75 = dma.done [#allocation6], 512
    $region37: #{tpu_custom_call.1} parent=1 // pred_fallthru
      _
    // Predicated region
    $region38: #{tpu_custom_call.1} parent=1 // pred_check
      _
    $region39: #{tpu_custom_call.1} parent=1 // pred_check_branch
      %77 = sbr.rel (0) target = $region41
    $region40: #{tpu_custom_call.1} parent=1 // pred_region
      %78 = dma.done [#allocation6], 512
    $region41: #{tpu_custom_call.1} parent=1 // pred_fallthru
      _
    // Predicated region
    $region42: #{tpu_custom_call.1} parent=1 // pred_check
      _
    $region43: #{tpu_custom_call.1} parent=1 // pred_check_branch
      %80 = sbr.rel (0) target = $region45
    $region44: #{tpu_custom_call.1} parent=1 // pred_region
      %81 = dma.done [#allocation9], 512
    $region45: #{tpu_custom_call.1} parent=1 // pred_fallthru
      _
    %v82 = vld [vmem:[#allocation2] sm:$0xff]
    %v83 = vld [vmem:[#allocation2 + $0x8] sm:$0xff]
    %v84 = vld [vmem:[#allocation5] sm:$0xff]
    %v85 = vld [vmem:[#allocation5 + $0x8] sm:$0xff]
    %v86 = vld [vmem:[#allocation5 + $0x10] sm:$0xff]
    %v87 = vld [vmem:[#allocation5 + $0x18] sm:$0xff]
    %v88 = vld [vmem:[%s4] sm:$0x1]
    %v90 = vlaneseq
    %v91 = vshrl.u32 %v90, 7
    %v92 = vsub.s32 0, %v91
    %v93 = vrot.slane %v88, %v92
    %vm95 = vcmask 261120
    %v97 = vsel %vm95, %v82, 0
    %v100 = vsel %vm95, %v83, 0
    %102 = vmatprep.subr.mxu0 0.0
    %103 = vmatpush1.msra.mxu0 %v84
    %104 = vmatprep.subr.mxu0 0.0
    %105 = vmatpush1.msra.mxu0 %v85
    %106 = vmatprep.subr.mxu0 0.0
    %107 = vmatpush1.msra.mxu0 %v86
    %108 = vmatprep.subr.mxu0 0.0
    %109 = vmatpush1.msra.mxu0 %v87
    %110 = vmatprep.subr.mxu0 0.0
    %111 = vmatpush1.msra.mxu0 0.0
    %112 = vmatprep.subr.mxu0 0.0
    %113 = vmatpush1.msra.mxu0 0.0
    %114 = vmatprep.subr.mxu0 0.0
    %115 = vmatpush1.msra.mxu0 0.0
    %116 = vmatprep.subr.mxu0 0.0
    %117 = vmatpush1.msra.mxu0 0.0
    %118 = vmatprep.subr.mxu0 0.0
    %119 = vmatpush1.msra.mxu0 0.0
    %120 = vmatprep.subr.mxu0 0.0
    %121 = vmatpush1.msra.mxu0 0.0
    %122 = vmatprep.subr.mxu0 0.0
    %123 = vmatpush1.msra.mxu0 0.0
    %124 = vmatprep.subr.mxu0 0.0
    %125 = vmatpush1.msra.mxu0 0.0
    %126 = vmatprep.subr.mxu0 0.0
    %127 = vmatpush1.msra.mxu0 0.0
    %128 = vmatprep.subr.mxu0 0.0
    %129 = vmatpush1.msra.mxu0 0.0
    %130 = vmatprep.subr.mxu0 0.0
    %131 = vmatpush1.msra.mxu0 0.0
    %132 = vmatprep.subr.mxu0 0.0
    %133 = vmatpush1.msra.mxu0 0.0
    %134 = vmatprep.subr.mxu0 0.0
    %135 = vmatpush1.msra.mxu0 0.0
    %136 = vmatprep.subr.mxu0 0.0
    %137 = vmatpush1.msra.mxu0 0.0
    %138 = vmatprep.subr.mxu0 0.0
    %139 = vmatpush1.msra.mxu0 0.0
    %140 = vmatprep.subr.mxu0 0.0
    %141 = vmatpush1.msra.mxu0 0.0
    %142 = vmatprep.subr.mxu0 0.0
    %143 = vmatpush1.msra.mxu0 0.0
    %144 = vmatprep.subr.mxu0 0.0
    %145 = vmatpush1.msra.mxu0 0.0
    %146 = vmatprep.subr.mxu0 0.0
    %147 = vmatpush1.msra.mxu0 0.0
    %148 = vmatprep.subr.mxu0 0.0
    %149 = vmatpush1.msra.mxu0 0.0
    %150 = vmatprep.subr.mxu0 0.0
    %151 = vmatpush1.msra.mxu0 0.0
    %152 = vmatprep.subr.mxu0 0.0
    %153 = vmatpush1.msra.mxu0 0.0
    %154 = vmatprep.subr.mxu0 0.0
    %155 = vmatpush1.msra.mxu0 0.0
    %156 = vmatprep.subr.mxu0 0.0
    %157 = vmatpush1.msra.mxu0 0.0
    %158 = vmatprep.subr.mxu0 0.0
    %159 = vmatpush1.msra.mxu0 0.0
    %160 = vmatprep.subr.mxu0 0.0
    %161 = vmatpush1.msra.mxu0 0.0
    %162 = vmatprep.subr.mxu0 0.0
    %163 = vmatpush1.msra.mxu0 0.0
    %164 = vmatprep.subr.mxu0 0.0
    %165 = vmatpush1.msra.mxu0 0.0
    %166 = vmatprep.mubr.f32.mxu0 0.0
    %167 = vmatmul.mubr.f32.gmra.mrb[0].mxu0 %v97
    %v168 = vpop.f32.mrb[0].mxu0
    %v169 = vadd.f32 %v93, %v168
    %v170 = vpop.f32.mrb[0].mxu0
    %171 = vmatprep.mubr.f32.mxu0 0.0
    %172 = vmatmul.mubr.f32.gmra.mrb[0].mxu0 %v100
    %v173 = vpop.f32.mrb[0].mxu0
    %v174 = vadd.f32 %v93, %v173
    %v175 = vpop.f32.mrb[0].mxu0
    %176 = vdwg.mxu0
    %v177 = vmax.f32 %v169, 0.0
    %v178 = vmax.f32 %v174, 0.0
    %v179 = vld [vmem:[#allocation7] sm:$0xff]
    %v180 = vld [vmem:[#allocation7 + $0x8] sm:$0xff]
    %v181 = vld [vmem:[#allocation7 + $0x10] sm:$0xff]
    %v182 = vld [vmem:[#allocation7 + $0x18] sm:$0xff]
    %v183 = vld [vmem:[%s5] sm:$0x1]
    %v185 = vlaneseq
    %v186 = vshrl.u32 %v185, 7
    %v187 = vsub.s32 0, %v186
    %v188 = vrot.slane %v183, %v187
    %v191 = vsel %vm95, %v177, 0
    %v194 = vsel %vm95, %v178, 0
    %196 = vmatprep.subr.mxu0 0.0
    %197 = vmatpush1.msra.mxu0 %v179
    %198 = vmatprep.subr.mxu0 0.0
    %199 = vmatpush1.msra.mxu0 %v180
    %200 = vmatprep.subr.mxu0 0.0
    %201 = vmatpush1.msra.mxu0 %v181
    %202 = vmatprep.subr.mxu0 0.0
    %203 = vmatpush1.msra.mxu0 %v182
    %204 = vmatprep.subr.mxu0 0.0
    %205 = vmatpush1.msra.mxu0 0.0
    %206 = vmatprep.subr.mxu0 0.0
    %207 = vmatpush1.msra.mxu0 0.0
    %208 = vmatprep.subr.mxu0 0.0
    %209 = vmatpush1.msra.mxu0 0.0
    %210 = vmatprep.subr.mxu0 0.0
    %211 = vmatpush1.msra.mxu0 0.0
    %212 = vmatprep.subr.mxu0 0.0
    %213 = vmatpush1.msra.mxu0 0.0
    %214 = vmatprep.subr.mxu0 0.0
    %215 = vmatpush1.msra.mxu0 0.0
    %216 = vmatprep.subr.mxu0 0.0
    %217 = vmatpush1.msra.mxu0 0.0
    %218 = vmatprep.subr.mxu0 0.0
    %219 = vmatpush1.msra.mxu0 0.0
    %220 = vmatprep.subr.mxu0 0.0
    %221 = vmatpush1.msra.mxu0 0.0
    %222 = vmatprep.subr.mxu0 0.0
    %223 = vmatpush1.msra.mxu0 0.0
    %224 = vmatprep.subr.mxu0 0.0
    %225 = vmatpush1.msra.mxu0 0.0
    %226 = vmatprep.subr.mxu0 0.0
    %227 = vmatpush1.msra.mxu0 0.0
    %228 = vmatprep.subr.mxu0 0.0
    %229 = vmatpush1.msra.mxu0 0.0
    %230 = vmatprep.subr.mxu0 0.0
    %231 = vmatpush1.msra.mxu0 0.0
    %232 = vmatprep.subr.mxu0 0.0
    %233 = vmatpush1.msra.mxu0 0.0
    %234 = vmatprep.subr.mxu0 0.0
    %235 = vmatpush1.msra.mxu0 0.0
    %236 = vmatprep.subr.mxu0 0.0
    %237 = vmatpush1.msra.mxu0 0.0
    %238 = vmatprep.subr.mxu0 0.0
    %239 = vmatpush1.msra.mxu0 0.0
    %240 = vmatprep.subr.mxu0 0.0
    %241 = vmatpush1.msra.mxu0 0.0
    %242 = vmatprep.subr.mxu0 0.0
    %243 = vmatpush1.msra.mxu0 0.0
    %244 = vmatprep.subr.mxu0 0.0
    %245 = vmatpush1.msra.mxu0 0.0
    %246 = vmatprep.subr.mxu0 0.0
    %247 = vmatpush1.msra.mxu0 0.0
    %248 = vmatprep.subr.mxu0 0.0
    %249 = vmatpush1.msra.mxu0 0.0
    %250 = vmatprep.subr.mxu0 0.0
    %251 = vmatpush1.msra.mxu0 0.0
    %252 = vmatprep.subr.mxu0 0.0
    %253 = vmatpush1.msra.mxu0 0.0
    %254 = vmatprep.subr.mxu0 0.0
    %255 = vmatpush1.msra.mxu0 0.0
    %256 = vmatprep.subr.mxu0 0.0
    %257 = vmatpush1.msra.mxu0 0.0
    %258 = vmatprep.subr.mxu0 0.0
    %259 = vmatpush1.msra.mxu0 0.0
    %260 = vmatprep.mubr.f32.mxu0 0.0
    %261 = vmatmul.mubr.f32.gmra.mrb[0].mxu0 %v191
    %v262 = vpop.f32.mrb[0].mxu0
    %v263 = vadd.f32 %v188, %v262
    %v264 = vpop.f32.mrb[0].mxu0
    %265 = vmatprep.mubr.f32.mxu0 0.0
    %266 = vmatmul.mubr.f32.gmra.mrb[0].mxu0 %v194
    %v267 = vpop.f32.mrb[0].mxu0
    %v268 = vadd.f32 %v188, %v267
    %v269 = vpop.f32.mrb[0].mxu0
    %270 = vdwg.mxu0
    %v271 = vmax.f32 %v263, 0.0
    %v272 = vmax.f32 %v268, 0.0
    %v273 = vld [vmem:[#allocation8] sm:$0xff]
    %v274 = vld [vmem:[#allocation8 + $0x8] sm:$0xff]
    %v275 = vld [vmem:[#allocation8 + $0x10] sm:$0xff]
    %v276 = vld [vmem:[#allocation8 + $0x18] sm:$0xff]
    %v277 = vld [vmem:[%s6] sm:$0x1]
    %v279 = vlaneseq
    %v280 = vshrl.u32 %v279, 7
    %v281 = vsub.s32 0, %v280
    %v282 = vrot.slane %v277, %v281
    %v285 = vsel %vm95, %v271, 0
    %v288 = vsel %vm95, %v272, 0
    %290 = vmatprep.subr.mxu0 0.0
    %291 = vmatpush1.msra.mxu0 %v273
    %292 = vmatprep.subr.mxu0 0.0
    %293 = vmatpush1.msra.mxu0 %v274
    %294 = vmatprep.subr.mxu0 0.0
    %295 = vmatpush1.msra.mxu0 %v275
    %296 = vmatprep.subr.mxu0 0.0
    %297 = vmatpush1.msra.mxu0 %v276
    %298 = vmatprep.subr.mxu0 0.0
    %299 = vmatpush1.msra.mxu0 0.0
    %300 = vmatprep.subr.mxu0 0.0
    %301 = vmatpush1.msra.mxu0 0.0
    %302 = vmatprep.subr.mxu0 0.0
    %303 = vmatpush1.msra.mxu0 0.0
    %304 = vmatprep.subr.mxu0 0.0
    %305 = vmatpush1.msra.mxu0 0.0
    %306 = vmatprep.subr.mxu0 0.0
    %307 = vmatpush1.msra.mxu0 0.0
    %308 = vmatprep.subr.mxu0 0.0
    %309 = vmatpush1.msra.mxu0 0.0
    %310 = vmatprep.subr.mxu0 0.0
    %311 = vmatpush1.msra.mxu0 0.0
    %312 = vmatprep.subr.mxu0 0.0
    %313 = vmatpush1.msra.mxu0 0.0
    %314 = vmatprep.subr.mxu0 0.0
    %315 = vmatpush1.msra.mxu0 0.0
    %316 = vmatprep.subr.mxu0 0.0
    %317 = vmatpush1.msra.mxu0 0.0
    %318 = vmatprep.subr.mxu0 0.0
    %319 = vmatpush1.msra.mxu0 0.0
    %320 = vmatprep.subr.mxu0 0.0
    %321 = vmatpush1.msra.mxu0 0.0
    %322 = vmatprep.subr.mxu0 0.0
    %323 = vmatpush1.msra.mxu0 0.0
    %324 = vmatprep.subr.mxu0 0.0
    %325 = vmatpush1.msra.mxu0 0.0
    %326 = vmatprep.subr.mxu0 0.0
    %327 = vmatpush1.msra.mxu0 0.0
    %328 = vmatprep.subr.mxu0 0.0
    %329 = vmatpush1.msra.mxu0 0.0
    %330 = vmatprep.subr.mxu0 0.0
    %331 = vmatpush1.msra.mxu0 0.0
    %332 = vmatprep.subr.mxu0 0.0
    %333 = vmatpush1.msra.mxu0 0.0
    %334 = vmatprep.subr.mxu0 0.0
    %335 = vmatpush1.msra.mxu0 0.0
    %336 = vmatprep.subr.mxu0 0.0
    %337 = vmatpush1.msra.mxu0 0.0
    %338 = vmatprep.subr.mxu0 0.0
    %339 = vmatpush1.msra.mxu0 0.0
    %340 = vmatprep.subr.mxu0 0.0
    %341 = vmatpush1.msra.mxu0 0.0
    %342 = vmatprep.subr.mxu0 0.0
    %343 = vmatpush1.msra.mxu0 0.0
    %344 = vmatprep.subr.mxu0 0.0
    %345 = vmatpush1.msra.mxu0 0.0
    %346 = vmatprep.subr.mxu0 0.0
    %347 = vmatpush1.msra.mxu0 0.0
    %348 = vmatprep.subr.mxu0 0.0
    %349 = vmatpush1.msra.mxu0 0.0
    %350 = vmatprep.subr.mxu0 0.0
    %351 = vmatpush1.msra.mxu0 0.0
    %352 = vmatprep.subr.mxu0 0.0
    %353 = vmatpush1.msra.mxu0 0.0
    %354 = vmatprep.mubr.f32.mxu0 0.0
    %355 = vmatmul.mubr.f32.gmra.mrb[0].mxu0 %v285
    %v356 = vpop.f32.mrb[0].mxu0
    %v357 = vadd.f32 %v282, %v356
    %v358 = vpop.f32.mrb[0].mxu0
    %359 = vmatprep.mubr.f32.mxu0 0.0
    %360 = vmatmul.mubr.f32.gmra.mrb[0].mxu0 %v288
    %v361 = vpop.f32.mrb[0].mxu0
    %v362 = vadd.f32 %v282, %v361
    %v363 = vpop.f32.mrb[0].mxu0
    %364 = vdwg.mxu0
    %365 = vst [vmem:[#allocation10] sm:$0xff] %v357
    %366 = vst [vmem:[#allocation10 + $0x8] sm:$0xff] %v362
    // Predicated region
    $region46: #{tpu_custom_call.1} parent=1 // pred_check
      _
    $region47: #{tpu_custom_call.1} parent=1 // pred_check_branch
      %368 = sbr.rel (0) target = $region49
    $region48: #{tpu_custom_call.1} parent=1 // pred_region
      %s370 = ssub.s32 256, 256
      %371 = vsyncadd [#allocation4], %s370
      %s372 = sshll.u32 [#allocation10], 4
      %s373 = int_to_ptr.vmem [resolvable:$true] %s372
      %378 = dma.vmem_to_hbm [thread:$0]  %s373, 256, %s7, [#allocation4], 128, 128, 8
    $region49: #{tpu_custom_call.1} parent=1 // pred_fallthru
      _
    // Predicated region
    $region50: #{tpu_custom_call.1} parent=1 // pred_check
      _
    $region51: #{tpu_custom_call.1} parent=1 // pred_check_branch
      %380 = sbr.rel (0) target = $region53
    $region52: #{tpu_custom_call.1} parent=1 // pred_region
      %381 = dma.done [#allocation4], 256
    $region53: #{tpu_custom_call.1} parent=1 // pred_fallthru
      _
    %382 = vsyncpa [#allocation3], 1
    %383 = vsyncpa [#allocation6], 1
    %384 = vsyncpa [#allocation9], 1
    %385 = vsyncpa [#allocation4], 1

</llo_original>
